<compile_context>
chip_gen: v7x
topology: tpu7x:2x2x1
jax: 0.10.0
libtpu: 0.0.40
codegen_flags: <defaults>
</compile_context>

<pallas_src>
import jax
import jax.numpy as jnp
from jax import lax
from jax.experimental import pallas as pl
from jax.experimental.pallas import tpu as pltpu


def _round_up(v, m):
    return (v + m - 1) // m * m


# ---------------------------------------------------------------------------
# Fused  matmul -> scale/bias (BN fold) -> [+residual] -> activation  kernel.
# ---------------------------------------------------------------------------
def _make_fused_kernel(act: str, has_residual: bool):
    def kernel(x_ref, w_ref, s_ref, b_ref, *rest):
        if has_residual:
            r_ref, o_ref = rest
        else:
            (o_ref,) = rest
        acc = jnp.dot(x_ref[...], w_ref[...], preferred_element_type=jnp.float32)
        y = acc * s_ref[...] + b_ref[...]
        if has_residual:
            y = y + r_ref[...]
        if act == "relu":
            y = jnp.maximum(y, 0.0)
        elif act == "sigmoid":
            y = 1.0 / (1.0 + jnp.exp(-y))
        o_ref[...] = y.astype(o_ref.dtype)

    return kernel


def fused_matmul_bn_act(x_mat, w_mat, scale, bias, *, act="none", residual=None,
                        out_dtype=jnp.float32):
    """y = act((x_mat @ w_mat) * scale + bias (+ residual)) with BN folded."""
    M, K = x_mat.shape
    Kw, N = w_mat.shape
    assert K == Kw, (K, Kw)

    # Lane-dense operands: pad contraction and output-channel dims to 128.
    K_pad = _round_up(K, 128)
    N_pad = _round_up(N, 128)
    # Largest M tile that still leaves >= ~4 grid steps at typical sizes so the
    # double-buffer pipeline can hide DMA.
    tm = 512 if M >= 2048 else 128
    M_pad = _round_up(M, tm)

    xp = jnp.pad(x_mat.astype(jnp.float32), ((0, M_pad - M), (0, K_pad - K)))
    wp = jnp.pad(w_mat.astype(jnp.float32), ((0, K_pad - K), (0, N_pad - N)))
    sp = jnp.pad(scale.astype(jnp.float32).reshape(1, N), ((0, 0), (0, N_pad - N)))
    bp = jnp.pad(bias.astype(jnp.float32).reshape(1, N), ((0, 0), (0, N_pad - N)))

    in_specs = [
        pl.BlockSpec((tm, K_pad), lambda i: (i, 0)),
        pl.BlockSpec((K_pad, N_pad), lambda i: (0, 0)),
        pl.BlockSpec((1, N_pad), lambda i: (0, 0)),
        pl.BlockSpec((1, N_pad), lambda i: (0, 0)),
    ]
    args = [xp, wp, sp, bp]
    if residual is not None:
        rp = jnp.pad(residual.astype(jnp.float32), ((0, M_pad - M), (0, N_pad - N)))
        in_specs.append(pl.BlockSpec((tm, N_pad), lambda i: (i, 0)))
        args.append(rp)

    flops = 2 * M_pad * K_pad * N_pad + 3 * M_pad * N_pad
    transcendentals = M_pad * N_pad if act == "sigmoid" else 0
    bytes_accessed = 4 * (M_pad * K_pad + K_pad * N_pad + 2 * N_pad
                          + M_pad * N_pad * (2 if residual is not None else 1))

    out = pl.pallas_call(
        _make_fused_kernel(act, residual is not None),
        out_shape=jax.ShapeDtypeStruct((M_pad, N_pad), out_dtype),
        grid_spec=pltpu.PrefetchScalarGridSpec(
            num_scalar_prefetch=0,
            grid=(M_pad // tm,),
            in_specs=in_specs,
            out_specs=pl.BlockSpec((tm, N_pad), lambda i: (i, 0)),
        ),
        compiler_params=pltpu.CompilerParams(
            dimension_semantics=("parallel",),
            vmem_limit_bytes=32 * 1024 * 1024,
        ),
        cost_estimate=pl.CostEstimate(
            flops=flops, transcendentals=transcendentals,
            bytes_accessed=bytes_accessed),
    )(*args)
    return out[:M, :N]


# ---------------------------------------------------------------------------
# Wrapper-side plumbing (layout / im2col / BN folding).
# ---------------------------------------------------------------------------
def _im2col3x3(x_nhwc, stride):
    B, H, W, C = x_nhwc.shape
    Ho = (H + 2 - 3) // stride + 1
    Wo = (W + 2 - 3) // stride + 1
    xp = jnp.pad(x_nhwc, ((0, 0), (1, 1), (1, 1), (0, 0)))
    cols = []
    for dy in range(3):
        for dx in range(3):
            cols.append(xp[:, dy:dy + (Ho - 1) * stride + 1:stride,
                              dx:dx + (Wo - 1) * stride + 1:stride, :])
    patches = jnp.concatenate(cols, axis=-1)            # (B, Ho, Wo, 9*C), (dy,dx,c)
    return patches.reshape(B * Ho * Wo, 9 * C), Ho, Wo


def _w3x3_to_mat(w):   # (Cout, Cin, 3, 3) -> (9*Cin, Cout) in (dy, dx, cin) row order
    cout, cin = w.shape[0], w.shape[1]
    return jnp.transpose(w, (2, 3, 1, 0)).reshape(9 * cin, cout)


def _w1x1_to_mat(w):   # (Cout, Cin, 1, 1) -> (Cin, Cout)
    return jnp.transpose(w[:, :, 0, 0], (1, 0))


def _fold_bn(conv_bias, gamma, beta, mean, var, eps=1e-5):
    scale = gamma / jnp.sqrt(var + eps)
    bias = beta + scale * (conv_bias - mean)
    return scale, bias


def fresnet_forward(x, p, stride=1):
    B, Cin, H, W = x.shape
    Cout = p["w1"].shape[0]
    x = x.astype(jnp.float32)
    x_nhwc = jnp.transpose(x, (0, 2, 3, 1))

    # ---- residual / shortcut -------------------------------------------------
    if "w_sc" in p:
        xs = x_nhwc[:, ::stride, ::stride, :].reshape(-1, Cin)
        s_sc, b_sc = _fold_bn(p["b_sc"], *p["bn_sc"])
        res_mat = fused_matmul_bn_act(xs, _w1x1_to_mat(p["w_sc"]), s_sc, b_sc)
    else:
        res_mat = x_nhwc[:, ::stride, ::stride, :].reshape(-1, Cout)

    # ---- conv1 -> bn1 -> relu --------------------------------------------------
    p1, Ho, Wo = _im2col3x3(x_nhwc, stride)
    s1, b1 = _fold_bn(p["b1"], *p["bn1"])
    h1 = fused_matmul_bn_act(p1, _w3x3_to_mat(p["w1"]), s1, b1, act="relu")

    # ---- conv2 -> bn2 -----------------------------------------------------------
    p2, _, _ = _im2col3x3(h1.reshape(B, Ho, Wo, Cout), 1)
    s2, b2 = _fold_bn(p["b2"], *p["bn2"])
    h2 = fused_matmul_bn_act(p2, _w3x3_to_mat(p["w2"]), s2, b2)

    # ---- frequency branch -------------------------------------------------------
    # TODO(synk): fft2/ifft2 + complex multiply/abs stay in jnp (no Pallas equiv).
    xf = jnp.fft.fft2(x)                                          # complex64, NCHW
    xr_mat = jnp.transpose(jnp.real(xf), (0, 2, 3, 1)).reshape(-1, Cin)
    s_wa, b_wa = _fold_bn(p["b_wa"], *p["bn_w"])
    g = fused_matmul_bn_act(xr_mat, _w1x1_to_mat(p["w_wa"]), s_wa, b_wa, act="relu")
    g = fused_matmul_bn_act(g, _w1x1_to_mat(p["w_wb"]),
                            jnp.ones((Cin,), jnp.float32), p["b_wb"], act="sigmoid")
    gate = jnp.transpose(g.reshape(B, H, W, Cin), (0, 3, 1, 2))
    out_f = jnp.abs(jnp.fft.ifft2(gate * xf))                     # (B, Cin, H, W)

    # ---- out: 1x1 conv over cat(out_f, out) -> BN, + residual, relu ------------
    out_f_mat = jnp.transpose(out_f, (0, 2, 3, 1)).reshape(-1, Cin)
    cat_mat = jnp.concatenate([out_f_mat, h2], axis=1)            # torch.cat channel order
    s_o, b_o = _fold_bn(p["b_out"], *p["bn_out"])
    y = fused_matmul_bn_act(cat_mat, _w1x1_to_mat(p["w_out"]), s_o, b_o,
                            act="relu", residual=res_mat)
    return jnp.transpose(y.reshape(B, Ho, Wo, Cout), (0, 3, 1, 2))


# ---------------------------------------------------------------------------
# Pure-JAX reference of the PyTorch forward (inference-mode BN), for checking.
# ---------------------------------------------------------------------------
def _conv2d_ref(x, w, b, stride=1, padding=0):
    dn = lax.conv_dimension_numbers(x.shape, w.shape, ("NCHW", "OIHW", "NCHW"))
    y = lax.conv_general_dilated(x, w, (stride, stride),
                                 [(padding, padding), (padding, padding)],
                                 dimension_numbers=dn,
                                 precision=lax.Precision.HIGHEST)
    return y + b[None, :, None, None]


def _bn_ref(x, gamma, beta, mean, var, eps=1e-5):
    inv = gamma / jnp.sqrt(var + eps)
    return inv[None, :, None, None] * (x - mean[None, :, None, None]) + beta[None, :, None, None]


def fresnet_reference(x, p, stride=1):
    x = x.astype(jnp.float32)
    residual = x
    if "w_sc" in p:
        residual = _bn_ref(_conv2d_ref(x, p["w_sc"], p["b_sc"], stride, 0), *p["bn_sc"])
    out = jax.nn.relu(_bn_ref(_conv2d_ref(x, p["w1"], p["b1"], stride, 1), *p["bn1"]))
    out = _bn_ref(_conv2d_ref(out, p["w2"], p["b2"], 1, 1), *p["bn2"])
    xf = jnp.fft.fft2(x)
    g = _conv2d_ref(jnp.real(xf), p["w_wa"], p["b_wa"], 1, 0)
    g = jax.nn.relu(_bn_ref(g, *p["bn_w"]))
    g = jax.nn.sigmoid(_conv2d_ref(g, p["w_wb"], p["b_wb"], 1, 0))
    out_f = jnp.abs(jnp.fft.ifft2(g * xf))
    out = _bn_ref(_conv2d_ref(jnp.concatenate([out_f, out], axis=1),
                              p["w_out"], p["b_out"], 1, 0), *p["bn_out"])
    return jax.nn.relu(out + residual)


# ---------------------------------------------------------------------------
# Deterministic parameter construction (stand-in for the PyTorch module state).
# ---------------------------------------------------------------------------
def init_params(key, cin, cout, stride=1):
    c_mid = max(cin // 16, 1)
    keys = list(jax.random.split(key, 48))
    it = iter(keys)

    def nrm(shape, s=0.1):
        return jax.random.normal(next(it), shape, jnp.float32) * s

    def bn(c):
        return (1.0 + nrm((c,)), nrm((c,)), nrm((c,)),
                0.5 + jax.random.uniform(next(it), (c,), jnp.float32))

    p = dict(
        w1=nrm((cout, cin, 3, 3)), b1=nrm((cout,)), bn1=bn(cout),
        w2=nrm((cout, cout, 3, 3)), b2=nrm((cout,)), bn2=bn(cout),
        w_wa=nrm((c_mid, cin, 1, 1)), b_wa=nrm((c_mid,)), bn_w=bn(c_mid),
        w_wb=nrm((cin, c_mid, 1, 1)), b_wb=nrm((cin,)),
        w_out=nrm((cout, cout + cin, 1, 1)), b_out=nrm((cout,)), bn_out=bn(cout),
    )
    if stride != 1 or cin != cout:
        p["w_sc"] = nrm((cout, cin, 1, 1))
        p["b_sc"] = nrm((cout,))
        p["bn_sc"] = bn(cout)
    return p


if __name__ == "__main__":
    B, Cin, Cout, H, W, stride = 2, 16, 32, 16, 16, 1

    key = jax.random.PRNGKey(0)
    kx, kp = jax.random.split(key)
    x = jax.random.normal(kx, (B, Cin, H, W), dtype=jnp.float32)
    params = init_params(kp, Cin, Cout, stride)

    out = jax.block_until_ready(fresnet_forward(x, params, stride))
    ref = jax.block_until_ready(fresnet_reference(x, params, stride))

    assert out.shape == (B, Cout, H, W), out.shape
    max_err = float(jnp.max(jnp.abs(out - ref)))
    assert jnp.allclose(out, ref, atol=2e-3, rtol=2e-3), f"mismatch vs reference, max|err|={max_err}"

    print("KERNEL_OK")
</pallas_src>

<mosaic_0001>
module attributes {stable_mosaic.version = 11 : i64} {
  func.func @kernel(%arg0: i32, %arg1: memref<128x128xf32, #tpu.memory_space<vmem>>, %arg2: memref<128x128xf32, #tpu.memory_space<vmem>>, %arg3: memref<1x128xf32, #tpu.memory_space<vmem>>, %arg4: memref<1x128xf32, #tpu.memory_space<vmem>>, %arg5: memref<128x128xf32, #tpu.memory_space<vmem>>) attributes {dimension_semantics = [#tpu.dimension_semantics<parallel>], iteration_bounds = array<i64: 4>, scalar_prefetch = 0 : i64, scratch_operands = 0 : i64, tpu.core_type = #tpu.core_type<tc>, window_params = [{transform_indices = @transform_0, window_bounds = array<i64: 128, 128>}, {pipeline_mode = #tpu.pipeline_mode<synchronous>, transform_indices = @transform_1, window_bounds = array<i64: 128, 128>}, {pipeline_mode = #tpu.pipeline_mode<synchronous>, transform_indices = @transform_2, window_bounds = array<i64: 1, 128>}, {pipeline_mode = #tpu.pipeline_mode<synchronous>, transform_indices = @transform_3, window_bounds = array<i64: 1, 128>}, {transform_indices = @transform_4, window_bounds = array<i64: 128, 128>}]} {
    %c0 = arith.constant 0 : index
    %c0_0 = arith.constant 0 : index
    %0 = vector.load %arg1[%c0, %c0_0] : memref<128x128xf32, #tpu.memory_space<vmem>>, vector<128x128xf32>
    %c0_1 = arith.constant 0 : index
    %c0_2 = arith.constant 0 : index
    %1 = vector.load %arg2[%c0_1, %c0_2] : memref<128x128xf32, #tpu.memory_space<vmem>>, vector<128x128xf32>
    %cst = arith.constant dense<0.000000e+00> : vector<128x128xf32>
    %2 = tpu.matmul %0, %1, %cst {dimension_numbers = #tpu.dot_dimension_numbers<[1], [0], [0], [1], [0, 0, 1, 1], [], []>} : vector<128x128xf32>, vector<128x128xf32>, vector<128x128xf32> -> vector<128x128xf32>
    %c0_3 = arith.constant 0 : index
    %c0_4 = arith.constant 0 : index
    %3 = vector.load %arg3[%c0_3, %c0_4] : memref<1x128xf32, #tpu.memory_space<vmem>>, vector<1x128xf32>
    %4 = vector.broadcast %3 : vector<1x128xf32> to vector<128x128xf32>
    %5 = arith.mulf %2, %4 : vector<128x128xf32>
    %c0_5 = arith.constant 0 : index
    %c0_6 = arith.constant 0 : index
    %6 = vector.load %arg4[%c0_5, %c0_6] : memref<1x128xf32, #tpu.memory_space<vmem>>, vector<1x128xf32>
    %7 = vector.broadcast %6 : vector<1x128xf32> to vector<128x128xf32>
    %8 = arith.addf %5, %7 : vector<128x128xf32>
    %c0_7 = arith.constant 0 : index
    %c0_8 = arith.constant 0 : index
    %9 = vector.load %arg5[%c0_7, %c0_8] : memref<128x128xf32, #tpu.memory_space<vmem>>, vector<128x128xf32>
    tpu.vector_store %arg5[%c0_7, %c0_8], %8 {strides = array<i32>} : memref<128x128xf32, #tpu.memory_space<vmem>>, vector<128x128xf32>,
    return
  }
  func.func @transform_0(%arg0: i32) -> (i32, i32) {
    %c0_i32 = arith.constant 0 : i32
    %c0_i32_0 = arith.constant 0 : i32
    return %arg0, %c0_i32 : i32, i32
  }
  func.func @transform_1(%arg0: i32) -> (i32, i32) {
    %c0_i32 = arith.constant 0 : i32
    %c0_i32_0 = arith.constant 0 : i32
    %c0_i32_1 = arith.constant 0 : i32
    return %c0_i32, %c0_i32_0 : i32, i32
  }
  func.func @transform_2(%arg0: i32) -> (i32, i32) {
    %c0_i32 = arith.constant 0 : i32
    %c0_i32_0 = arith.constant 0 : i32
    %c0_i32_1 = arith.constant 0 : i32
    return %c0_i32, %c0_i32_0 : i32, i32
  }
  func.func @transform_3(%arg0: i32) -> (i32, i32) {
    %c0_i32 = arith.constant 0 : i32
    %c0_i32_0 = arith.constant 0 : i32
    %c0_i32_1 = arith.constant 0 : i32
    return %c0_i32, %c0_i32_0 : i32, i32
  }
  func.func @transform_4(%arg0: i32) -> (i32, i32) {
    %c0_i32 = arith.constant 0 : i32
    %c0_i32_0 = arith.constant 0 : i32
    return %arg0, %c0_i32 : i32, i32
  }
}

</mosaic_0001>

<llo_original>
// kernel: tpu_custom_call.1
$region0: #{tpu_custom_call.1}
  #allocation0 [shape = 'u32[]', space=smem, size = 0x4, offset = 0x4, fixed_abs, tag = 'smem constant byte address 0x4 - core index']
  #allocation1 [shape = 'u32[144,128]{1,0:T(1,128)}', space=vmem, size = 0x12000, scoped, tag = 'internal scratch']
  %s0 = inlined_call_operand.hbm [shape: f32[512,128], index: 0, kind: input, shape index: {}]
  %s1 = inlined_call_operand.hbm [shape: f32[128,128], index: 1, kind: input, shape index: {}]
  %s2 = inlined_call_operand.vmem [shape: f32[1,128], index: 2, kind: input, shape index: {}]
  %s3 = inlined_call_operand.vmem [shape: f32[1,128], index: 3, kind: input, shape index: {}]
  %s4 = inlined_call_operand.hbm [shape: f32[512,128], index: 4, kind: output, shape index: {}]
  %s5 = sld [smem:[#allocation0]]
  $region57: #{tpu_custom_call.1} parent=0
    _
  %s7 = ssub.s32 1, %s5
  %s8 = scalar_select 0, %s7, %s5
  $region1: #{tpu_custom_call.1} parent=0
    #allocation2 [shape = 'u8[131072]{0}', space=vmem, size = 0x20000, scoped, tag = 'input window, operand 0']
    #allocation3 [shape = 's32[2]{0}', space=sflag, size = 0x8, scoped, tag = 'scoped memory for tpu_custom_call.1']
    #allocation4 [shape = 's32[2]{0}', space=sflag, size = 0x8, scoped, tag = 'scoped memory for tpu_custom_call.1']
    #allocation5 [shape = 'u8[65536]{0}', space=vmem, size = 0x10000, scoped, tag = 'input window, operand 1, single buffered']
    #allocation6 [shape = 's32[1]{0}', space=sflag, size = 0x4, scoped, tag = 'scoped memory for tpu_custom_call.1']
    #allocation7 [shape = 'u8[131072]{0}', space=vmem, size = 0x20000, scoped, tag = 'output window, operand 0']
    %9 = vsyncpa [#allocation3], 0
    %s10 = scalar_lea.sflag [#allocation3], 1
    %11 = vsyncpa %s10, 0
    %12 = vsyncpa [#allocation6], 0
    %13 = vsyncpa [#allocation4], 0
    %s14 = scalar_lea.sflag [#allocation4], 1
    %15 = vsyncpa %s14, 0
    loop: start=0, step=1, limit=6
    $region2: #{tpu_custom_call.1} parent=1 // loop_pre_header
      _
    $region3: #{tpu_custom_call.1} parent=1 // loop_header
      %s17 = sphi 0, %s21
      %p18 = scmp.ge.s32.totalorder %s17, 6
      %s27 = sphi 0, %s29
      %s30 = sphi 0, %s27
      %s31 = sphi 0, %s30
      %s47 = sphi 0, %s31
      %s51 = sphi 0, %s51
      %s53 = sphi 0, %s51
      %s54 = sphi 0, %s53
      %s68 = sphi 0, %s54
      %s72 = sphi 0, %s72
      %s74 = sphi 0, %s72
      %s75 = sphi 0, %s74
      %s89 = sphi 0, %s75
      %s93 = sphi 0, %s93
      %s95 = sphi 0, %s93
      %s96 = sphi 0, %s95
      %s110 = sphi 0, %s96
      %s116 = sphi 0, %s118
      %s119 = sphi 0, %s116
      %s120 = sphi 0, %s119
      %s136 = sphi 0, %s120
    $region4: #{tpu_custom_call.1} parent=1 // loop_header_branch
      %20 = sbr.rel (%p18) target = $region8
    $region5: #{tpu_custom_call.1} parent=1 // loop_body
      %s22 = ssub.s32 %s17, 1
      %s23 = ssub.s32 %s17, 2
      %s24 = sadd.s32 %s17, 1
      %s25 = ssub.s32 %s17, %s24
      %p26 = scmp.eq.s32.totalorder %s25, 0
      %s28 = sadd.s32 %s27, 1
      %s29 = scalar_select %p26, %s27, %s28
      %p32 = pneg %p26
      %p33 = scmp.eq.s32.totalorder %s17, 3
      %p34 = por %p32, %p33
      %p35 = scmp.ne.s32.totalorder %s27, %s30
      %p36 = scmp.eq.s32.totalorder %s17, 0
      %p37 = por %p35, %p36
      %p38 = scmp.ne.s32.totalorder %s27, %s30
      %p39 = scmp.eq.s32.totalorder %s22, 3
      %p40 = por %p38, %p39
      %p41 = scmp.ne.s32.totalorder %s30, %s31
      %p42 = scmp.eq.s32.totalorder %s22, 0
      %p43 = por %p41, %p42
      %p44 = scmp.ne.s32.totalorder %s30, %s31
      %p45 = scmp.eq.s32.totalorder %s23, 3
      %p46 = por %p44, %p45
      %p48 = scmp.ne.s32.totalorder %s31, %s47
      %p49 = scmp.eq.s32.totalorder %s23, 0
      %p50 = por %p48, %p49
      %s52 = sadd.s32 %s51, 1
      %p55 = scmp.eq.s32.totalorder %s17, 3
      %p56 = scmp.ne.s32.totalorder %s51, %s53
      %p57 = scmp.eq.s32.totalorder %s17, 0
      %p58 = por %p56, %p57
      %p59 = scmp.ne.s32.totalorder %s51, %s53
      %p60 = scmp.eq.s32.totalorder %s22, 3
      %p61 = por %p59, %p60
      %p62 = scmp.ne.s32.totalorder %s53, %s54
      %p63 = scmp.eq.s32.totalorder %s22, 0
      %p64 = por %p62, %p63
      %p65 = scmp.ne.s32.totalorder %s53, %s54
      %p66 = scmp.eq.s32.totalorder %s23, 3
      %p67 = por %p65, %p66
      %p69 = scmp.ne.s32.totalorder %s54, %s68
      %p70 = scmp.eq.s32.totalorder %s23, 0
      %p71 = por %p69, %p70
      %s73 = sadd.s32 %s72, 1
      %p76 = scmp.eq.s32.totalorder %s17, 3
      %p77 = scmp.ne.s32.totalorder %s72, %s74
      %p78 = scmp.eq.s32.totalorder %s17, 0
      %p79 = por %p77, %p78
      %p80 = scmp.ne.s32.totalorder %s72, %s74
      %p81 = scmp.eq.s32.totalorder %s22, 3
      %p82 = por %p80, %p81
      %p83 = scmp.ne.s32.totalorder %s74, %s75
      %p84 = scmp.eq.s32.totalorder %s22, 0
      %p85 = por %p83, %p84
      %p86 = scmp.ne.s32.totalorder %s74, %s75
      %p87 = scmp.eq.s32.totalorder %s23, 3
      %p88 = por %p86, %p87
      %p90 = scmp.ne.s32.totalorder %s75, %s89
      %p91 = scmp.eq.s32.totalorder %s23, 0
      %p92 = por %p90, %p91
      %s94 = sadd.s32 %s93, 1
      %p97 = scmp.eq.s32.totalorder %s17, 3
      %p98 = scmp.ne.s32.totalorder %s93, %s95
      %p99 = scmp.eq.s32.totalorder %s17, 0
      %p100 = por %p98, %p99
      %p101 = scmp.ne.s32.totalorder %s93, %s95
      %p102 = scmp.eq.s32.totalorder %s22, 3
      %p103 = por %p101, %p102
      %p104 = scmp.ne.s32.totalorder %s95, %s96
      %p105 = scmp.eq.s32.totalorder %s22, 0
      %p106 = por %p104, %p105
      %p107 = scmp.ne.s32.totalorder %s95, %s96
      %p108 = scmp.eq.s32.totalorder %s23, 3
      %p109 = por %p107, %p108
      %p111 = scmp.ne.s32.totalorder %s96, %s110
      %p112 = scmp.eq.s32.totalorder %s23, 0
      %p113 = por %p111, %p112
      %s114 = ssub.s32 %s17, %s24
      %p115 = scmp.eq.s32.totalorder %s114, 0
      %s117 = sadd.s32 %s116, 1
      %s118 = scalar_select %p115, %s116, %s117
      %p121 = pneg %p115
      %p122 = scmp.eq.s32.totalorder %s17, 3
      %p123 = por %p121, %p122
      %p124 = scmp.ne.s32.totalorder %s116, %s119
      %p125 = scmp.eq.s32.totalorder %s17, 0
      %p126 = por %p124, %p125
      %p127 = scmp.ne.s32.totalorder %s116, %s119
      %p128 = scmp.eq.s32.totalorder %s22, 3
      %p129 = por %p127, %p128
      %p130 = scmp.ne.s32.totalorder %s119, %s120
      %p131 = scmp.eq.s32.totalorder %s22, 0
      %p132 = por %p130, %p131
      %p133 = scmp.ne.s32.totalorder %s119, %s120
      %p134 = scmp.eq.s32.totalorder %s23, 3
      %p135 = por %p133, %p134
      %p137 = scmp.ne.s32.totalorder %s120, %s136
      %p138 = scmp.eq.s32.totalorder %s23, 0
      %p139 = por %p137, %p138
      %p140 = scmp.le.s32.totalorder 1, %s17
      %p141 = scmp.lt.s32.totalorder %s17, 5
      %p142 = pnand %p140, %p141
      %p143 = pneg %p142
      // Predicated region
      $region9: #{tpu_custom_call.1} parent=5 // pred_check
        _
      $region10: #{tpu_custom_call.1} parent=5 // pred_check_branch
        %145 = sbr.rel (%p142) target = $region12
      $region11: #{tpu_custom_call.1} parent=5 // pred_region
        %s146 = ssub.s32 %s17, 1
        // Predicated region
        $region13: #{tpu_custom_call.1} parent=11 // pred_check
          %p147 = pneg %p64
        $region14: #{tpu_custom_call.1} parent=11 // pred_check_branch
          %149 = sbr.rel (%p147) target = $region16
        $region15: #{tpu_custom_call.1} parent=11 // pred_region
          %s151 = ssub.s32 2048, 2048
          %152 = vsyncadd [#allocation6], %s151
          %s153 = sshll.u32 [#allocation5], 4
          %s154 = int_to_ptr.vmem [resolvable:$true] %s153
          %159 = dma.hbm_to_vmem [thread:$0]  %s1, 2048, %s154, [#allocation6], 128, 128, 8
        $region16: #{tpu_custom_call.1} parent=11 // pred_fallthru
          _
        // Predicated region
        $region17: #{tpu_custom_call.1} parent=11 // pred_check
          %p160 = pneg %p85
        $region18: #{tpu_custom_call.1} parent=11 // pred_check_branch
          %162 = sbr.rel (%p160) target = $region20
        $region19: #{tpu_custom_call.1} parent=11 // pred_region
          _
        $region20: #{tpu_custom_call.1} parent=11 // pred_fallthru
          _
        // Predicated region
        $region21: #{tpu_custom_call.1} parent=11 // pred_check
          %p163 = pneg %p106
        $region22: #{tpu_custom_call.1} parent=11 // pred_check_branch
          %165 = sbr.rel (%p163) target = $region24
        $region23: #{tpu_custom_call.1} parent=11 // pred_region
          _
        $region24: #{tpu_custom_call.1} parent=11 // pred_fallthru
          _
      $region12: #{tpu_custom_call.1} parent=5 // pred_fallthru
        _
      %p166 = scmp.lt.s32.totalorder %s17, 4
      // Predicated region
      $region25: #{tpu_custom_call.1} parent=5 // pred_check
        %p167 = pneg %p166
      $region26: #{tpu_custom_call.1} parent=5 // pred_check_branch
        %169 = sbr.rel (%p167) target = $region28
      $region27: #{tpu_custom_call.1} parent=5 // pred_region
        // Predicated region
        $region29: #{tpu_custom_call.1} parent=27 // pred_check
          %p170 = pneg %p37
        $region30: #{tpu_custom_call.1} parent=27 // pred_check_branch
          %172 = sbr.rel (%p170) target = $region32
        $region31: #{tpu_custom_call.1} parent=27 // pred_region
          %s173 = sand.u32 %s27, 1
          %s174 = scalar_lea.sflag [#allocation3], %s173
          %s175 = sand.u32 %s27, 1
          %s176 = smul.addr %s175, 128
          %s177 = scalar_lea.vmem [#allocation2], %s176
          %s178 = smul.u32 16, %s17
          %s180 = ssub.s32 2048, 2048
          %181 = vsyncadd %s174, %s180
          %s182 = smul.addr %s178, 128
          %s183 = scalar_lea.hbm %s0, %s182
          %s184 = sshll.u32 %s177, 4
          %s185 = int_to_ptr.vmem [resolvable:$true] %s184
          %190 = dma.hbm_to_vmem [thread:$0]  %s183, 2048, %s185, %s174, 128, 128, 8
        $region32: #{tpu_custom_call.1} parent=27 // pred_fallthru
          _
      $region28: #{tpu_custom_call.1} parent=5 // pred_fallthru
        _
      %p191 = scmp.le.s32.totalorder 1, %s17
      %p192 = scmp.lt.s32.totalorder %s17, 5
      %p193 = pnand %p191, %p192
      %p194 = pneg %p193
      // Predicated region
      $region33: #{tpu_custom_call.1} parent=5 // pred_check
        _
      $region34: #{tpu_custom_call.1} parent=5 // pred_check_branch
        %196 = sbr.rel (%p193) target = $region36
      $region35: #{tpu_custom_call.1} parent=5 // pred_region
        %s197 = ssub.s32 %s17, 1
        %s198 = sand.u32 %s30, 1
        %s199 = scalar_lea.sflag [#allocation3], %s198
        %s200 = sand.u32 %s30, 1
        %s201 = smul.addr %s200, 128
        %s202 = scalar_lea.vmem [#allocation2], %s201
        // Predicated region
        $region37: #{tpu_custom_call.1} parent=35 // pred_check
          %p203 = pneg %p43
        $region38: #{tpu_custom_call.1} parent=35 // pred_check_branch
          %205 = sbr.rel (%p203) target = $region40
        $region39: #{tpu_custom_call.1} parent=35 // pred_region
          %206 = dma.done %s199, 2048
        $region40: #{tpu_custom_call.1} parent=35 // pred_fallthru
          _
        // Predicated region
        $region41: #{tpu_custom_call.1} parent=35 // pred_check
          %p207 = pneg %p64
        $region42: #{tpu_custom_call.1} parent=35 // pred_check_branch
          %209 = sbr.rel (%p207) target = $region44
        $region43: #{tpu_custom_call.1} parent=35 // pred_region
          %210 = dma.done [#allocation6], 2048
        $region44: #{tpu_custom_call.1} parent=35 // pred_fallthru
          _
        %s211 = sand.u32 %s30, 1
        %s212 = scalar_lea.sflag [#allocation3], %s211
        %s213 = sand.u32 %s30, 1
        %s214 = smul.addr %s213, 128
        %s215 = scalar_lea.vmem [#allocation2], %s214
        %p216 = pneg %p43
        %p217 = pneg %p40
        %p218 = pneg %p64
        %p219 = pneg %p61
        %p220 = pneg %p85
        %p221 = pneg %p82
        %p222 = pneg %p106
        %p223 = pneg %p103
        %p224 = pneg %p132
        %p225 = pneg %p129
        %s226 = sand.u32 %s119, 1
        %s227 = scalar_lea.sflag [#allocation4], %s226
        %s228 = sand.u32 %s119, 1
        %s229 = smul.addr %s228, 128
        %s230 = scalar_lea.vmem [#allocation7], %s229
        %s231 = smul.u32 16, %s22
        %s232 = smul.u32 16, %s22
        %v233 = vld [vmem:[%s202] sm:$0xff]
        %v234 = vld [vmem:[%s202 + $0x8] sm:$0xff]
        %v235 = vld [vmem:[%s202 + $0x10] sm:$0xff]
        %v236 = vld [vmem:[%s202 + $0x18] sm:$0xff]
        %v237 = vld [vmem:[%s202 + $0x20] sm:$0xff]
        %v238 = vld [vmem:[%s202 + $0x28] sm:$0xff]
        %v239 = vld [vmem:[%s202 + $0x30] sm:$0xff]
        %v240 = vld [vmem:[%s202 + $0x38] sm:$0xff]
        %v241 = vld [vmem:[%s202 + $0x40] sm:$0xff]
        %v242 = vld [vmem:[%s202 + $0x48] sm:$0xff]
        %v243 = vld [vmem:[%s202 + $0x50] sm:$0xff]
        %v244 = vld [vmem:[%s202 + $0x58] sm:$0xff]
        %v245 = vld [vmem:[%s202 + $0x60] sm:$0xff]
        %v246 = vld [vmem:[%s202 + $0x68] sm:$0xff]
        %v247 = vld [vmem:[%s202 + $0x70] sm:$0xff]
        %v248 = vld [vmem:[%s202 + $0x78] sm:$0xff]
        %v249 = vld [vmem:[#allocation5] sm:$0xff]
        %v250 = vld [vmem:[#allocation5 + $0x8] sm:$0xff]
        %v251 = vld [vmem:[#allocation5 + $0x10] sm:$0xff]
        %v252 = vld [vmem:[#allocation5 + $0x18] sm:$0xff]
        %v253 = vld [vmem:[#allocation5 + $0x20] sm:$0xff]
        %v254 = vld [vmem:[#allocation5 + $0x28] sm:$0xff]
        %v255 = vld [vmem:[#allocation5 + $0x30] sm:$0xff]
        %v256 = vld [vmem:[#allocation5 + $0x38] sm:$0xff]
        %v257 = vld [vmem:[#allocation5 + $0x40] sm:$0xff]
        %v258 = vld [vmem:[#allocation5 + $0x48] sm:$0xff]
        %v259 = vld [vmem:[#allocation5 + $0x50] sm:$0xff]
        %v260 = vld [vmem:[#allocation5 + $0x58] sm:$0xff]
        %v261 = vld [vmem:[#allocation5 + $0x60] sm:$0xff]
        %v262 = vld [vmem:[#allocation5 + $0x68] sm:$0xff]
        %v263 = vld [vmem:[#allocation5 + $0x70] sm:$0xff]
        %v264 = vld [vmem:[#allocation5 + $0x78] sm:$0xff]
        %265 = vmatprep.subr.mxu0 0.0
        %266 = vmatpush1.msra.mxu0 %v249
        %267 = vmatprep.subr.mxu0 0.0
        %268 = vmatpush1.msra.mxu0 %v250
        %269 = vmatprep.subr.mxu0 0.0
        %270 = vmatpush1.msra.mxu0 %v251
        %271 = vmatprep.subr.mxu0 0.0
        %272 = vmatpush1.msra.mxu0 %v252
        %273 = vmatprep.subr.mxu0 0.0
        %274 = vmatpush1.msra.mxu0 %v253
        %275 = vmatprep.subr.mxu0 0.0
        %276 = vmatpush1.msra.mxu0 %v254
        %277 = vmatprep.subr.mxu0 0.0
        %278 = vmatpush1.msra.mxu0 %v255
        %279 = vmatprep.subr.mxu0 0.0
        %280 = vmatpush1.msra.mxu0 %v256
        %281 = vmatprep.subr.mxu0 0.0
        %282 = vmatpush1.msra.mxu0 %v257
        %283 = vmatprep.subr.mxu0 0.0
        %284 = vmatpush1.msra.mxu0 %v258
        %285 = vmatprep.subr.mxu0 0.0
        %286 = vmatpush1.msra.mxu0 %v259
        %287 = vmatprep.subr.mxu0 0.0
        %288 = vmatpush1.msra.mxu0 %v260
        %289 = vmatprep.subr.mxu0 0.0
        %290 = vmatpush1.msra.mxu0 %v261
        %291 = vmatprep.subr.mxu0 0.0
        %292 = vmatpush1.msra.mxu0 %v262
        %293 = vmatprep.subr.mxu0 0.0
        %294 = vmatpush1.msra.mxu0 %v263
        %295 = vmatprep.subr.mxu0 0.0
        %296 = vmatpush1.msra.mxu0 %v264
        %297 = vmatprep.subr.mxu0 0.0
        %298 = vmatpush1.msra.mxu0 0.0
        %299 = vmatprep.subr.mxu0 0.0
        %300 = vmatpush1.msra.mxu0 0.0
        %301 = vmatprep.subr.mxu0 0.0
        %302 = vmatpush1.msra.mxu0 0.0
        %303 = vmatprep.subr.mxu0 0.0
        %304 = vmatpush1.msra.mxu0 0.0
        %305 = vmatprep.subr.mxu0 0.0
        %306 = vmatpush1.msra.mxu0 0.0
        %307 = vmatprep.subr.mxu0 0.0
        %308 = vmatpush1.msra.mxu0 0.0
        %309 = vmatprep.subr.mxu0 0.0
        %310 = vmatpush1.msra.mxu0 0.0
        %311 = vmatprep.subr.mxu0 0.0
        %312 = vmatpush1.msra.mxu0 0.0
        %313 = vmatprep.subr.mxu0 0.0
        %314 = vmatpush1.msra.mxu0 0.0
        %315 = vmatprep.subr.mxu0 0.0
        %316 = vmatpush1.msra.mxu0 0.0
        %317 = vmatprep.subr.mxu0 0.0
        %318 = vmatpush1.msra.mxu0 0.0
        %319 = vmatprep.subr.mxu0 0.0
        %320 = vmatpush1.msra.mxu0 0.0
        %321 = vmatprep.subr.mxu0 0.0
        %322 = vmatpush1.msra.mxu0 0.0
        %323 = vmatprep.subr.mxu0 0.0
        %324 = vmatpush1.msra.mxu0 0.0
        %325 = vmatprep.subr.mxu0 0.0
        %326 = vmatpush1.msra.mxu0 0.0
        %327 = vmatprep.subr.mxu0 0.0
        %328 = vmatpush1.msra.mxu0 0.0
        %329 = vmatprep.mubr.f32.mxu0 0.0
        %330 = vmatmul.mubr.f32.gmra.mrb[0].mxu0 %v233
        %v331 = vpop.f32.mrb[0].mxu0
        %v332 = vadd.f32 0.0, %v331
        %v333 = vpop.f32.mrb[0].mxu0
        %334 = vmatprep.mubr.f32.mxu0 0.0
        %335 = vmatmul.mubr.f32.gmra.mrb[0].mxu0 %v234
        %v336 = vpop.f32.mrb[0].mxu0
        %v337 = vadd.f32 0.0, %v336
        %v338 = vpop.f32.mrb[0].mxu0
        %339 = vmatprep.mubr.f32.mxu0 0.0
        %340 = vmatmul.mubr.f32.gmra.mrb[0].mxu0 %v235
        %v341 = vpop.f32.mrb[0].mxu0
        %v342 = vadd.f32 0.0, %v341
        %v343 = vpop.f32.mrb[0].mxu0
        %344 = vmatprep.mubr.f32.mxu0 0.0
        %345 = vmatmul.mubr.f32.gmra.mrb[0].mxu0 %v236
        %v346 = vpop.f32.mrb[0].mxu0
        %v347 = vadd.f32 0.0, %v346
        %v348 = vpop.f32.mrb[0].mxu0
        %349 = vmatprep.mubr.f32.mxu0 0.0
        %350 = vmatmul.mubr.f32.gmra.mrb[0].mxu0 %v237
        %v351 = vpop.f32.mrb[0].mxu0
        %v352 = vadd.f32 0.0, %v351
        %v353 = vpop.f32.mrb[0].mxu0
        %354 = vmatprep.mubr.f32.mxu0 0.0
        %355 = vmatmul.mubr.f32.gmra.mrb[0].mxu0 %v238
        %v356 = vpop.f32.mrb[0].mxu0
        %v357 = vadd.f32 0.0, %v356
        %v358 = vpop.f32.mrb[0].mxu0
        %359 = vmatprep.mubr.f32.mxu0 0.0
        %360 = vmatmul.mubr.f32.gmra.mrb[0].mxu0 %v239
        %v361 = vpop.f32.mrb[0].mxu0
        %v362 = vadd.f32 0.0, %v361
        %v363 = vpop.f32.mrb[0].mxu0
        %364 = vmatprep.mubr.f32.mxu0 0.0
        %365 = vmatmul.mubr.f32.gmra.mrb[0].mxu0 %v240
        %v366 = vpop.f32.mrb[0].mxu0
        %v367 = vadd.f32 0.0, %v366
        %v368 = vpop.f32.mrb[0].mxu0
        %369 = vmatprep.mubr.f32.mxu0 0.0
        %370 = vmatmul.mubr.f32.gmra.mrb[0].mxu0 %v241
        %v371 = vpop.f32.mrb[0].mxu0
        %v372 = vadd.f32 0.0, %v371
        %v373 = vpop.f32.mrb[0].mxu0
        %374 = vmatprep.mubr.f32.mxu0 0.0
        %375 = vmatmul.mubr.f32.gmra.mrb[0].mxu0 %v242
        %v376 = vpop.f32.mrb[0].mxu0
        %v377 = vadd.f32 0.0, %v376
        %v378 = vpop.f32.mrb[0].mxu0
        %379 = vmatprep.mubr.f32.mxu0 0.0
        %380 = vmatmul.mubr.f32.gmra.mrb[0].mxu0 %v243
        %v381 = vpop.f32.mrb[0].mxu0
        %v382 = vadd.f32 0.0, %v381
        %v383 = vpop.f32.mrb[0].mxu0
        %384 = vmatprep.mubr.f32.mxu0 0.0
        %385 = vmatmul.mubr.f32.gmra.mrb[0].mxu0 %v244
        %v386 = vpop.f32.mrb[0].mxu0
        %v387 = vadd.f32 0.0, %v386
        %v388 = vpop.f32.mrb[0].mxu0
        %389 = vmatprep.mubr.f32.mxu0 0.0
        %390 = vmatmul.mubr.f32.gmra.mrb[0].mxu0 %v245
        %v391 = vpop.f32.mrb[0].mxu0
        %v392 = vadd.f32 0.0, %v391
        %v393 = vpop.f32.mrb[0].mxu0
        %394 = vmatprep.mubr.f32.mxu0 0.0
        %395 = vmatmul.mubr.f32.gmra.mrb[0].mxu0 %v246
        %v396 = vpop.f32.mrb[0].mxu0
        %v397 = vadd.f32 0.0, %v396
        %v398 = vpop.f32.mrb[0].mxu0
        %399 = vmatprep.mubr.f32.mxu0 0.0
        %400 = vmatmul.mubr.f32.gmra.mrb[0].mxu0 %v247
        %v401 = vpop.f32.mrb[0].mxu0
        %v402 = vadd.f32 0.0, %v401
        %v403 = vpop.f32.mrb[0].mxu0
        %404 = vmatprep.mubr.f32.mxu0 0.0
        %405 = vmatmul.mubr.f32.gmra.mrb[0].mxu0 %v248
        %v406 = vpop.f32.mrb[0].mxu0
        %v407 = vadd.f32 0.0, %v406
        %v408 = vpop.f32.mrb[0].mxu0
        %409 = vdwg.mxu0
        %v410 = vld [vmem:[%s2] sm:$0x1]
        %v412 = vlaneseq
        %v413 = vshrl.u32 %v412, 7
        %v414 = vsub.s32 0, %v413
        %v415 = vrot.slane %v410, %v414
        %v417 = vmul.f32 %v332, %v415
        %v418 = vmul.f32 %v337, %v415
        %v419 = vmul.f32 %v342, %v415
        %v420 = vmul.f32 %v347, %v415
        %v421 = vmul.f32 %v352, %v415
        %v422 = vmul.f32 %v357, %v415
        %v423 = vmul.f32 %v362, %v415
        %v424 = vmul.f32 %v367, %v415
        %v425 = vmul.f32 %v372, %v415
        %v426 = vmul.f32 %v377, %v415
        %v427 = vmul.f32 %v382, %v415
        %v428 = vmul.f32 %v387, %v415
        %v429 = vmul.f32 %v392, %v415
        %v430 = vmul.f32 %v397, %v415
        %v431 = vmul.f32 %v402, %v415
        %v432 = vmul.f32 %v407, %v415
        %v433 = vld [vmem:[%s3] sm:$0x1]
        %v435 = vlaneseq
        %v436 = vshrl.u32 %v435, 7
        %v437 = vsub.s32 0, %v436
        %v438 = vrot.slane %v433, %v437
        %v440 = vadd.f32 %v417, %v438
        %v441 = vadd.f32 %v418, %v438
        %v442 = vadd.f32 %v419, %v438
        %v443 = vadd.f32 %v420, %v438
        %v444 = vadd.f32 %v421, %v438
        %v445 = vadd.f32 %v422, %v438
        %v446 = vadd.f32 %v423, %v438
        %v447 = vadd.f32 %v424, %v438
        %v448 = vadd.f32 %v425, %v438
        %v449 = vadd.f32 %v426, %v438
        %v450 = vadd.f32 %v427, %v438
        %v451 = vadd.f32 %v428, %v438
        %v452 = vadd.f32 %v429, %v438
        %v453 = vadd.f32 %v430, %v438
        %v454 = vadd.f32 %v431, %v438
        %v455 = vadd.f32 %v432, %v438
        %456 = vst [vmem:[%s230] sm:$0xff] %v440
        %457 = vst [vmem:[%s230 + $0x8] sm:$0xff] %v441
        %458 = vst [vmem:[%s230 + $0x10] sm:$0xff] %v442
        %459 = vst [vmem:[%s230 + $0x18] sm:$0xff] %v443
        %460 = vst [vmem:[%s230 + $0x20] sm:$0xff] %v444
        %461 = vst [vmem:[%s230 + $0x28] sm:$0xff] %v445
        %462 = vst [vmem:[%s230 + $0x30] sm:$0xff] %v446
        %463 = vst [vmem:[%s230 + $0x38] sm:$0xff] %v447
        %464 = vst [vmem:[%s230 + $0x40] sm:$0xff] %v448
        %465 = vst [vmem:[%s230 + $0x48] sm:$0xff] %v449
        %466 = vst [vmem:[%s230 + $0x50] sm:$0xff] %v450
        %467 = vst [vmem:[%s230 + $0x58] sm:$0xff] %v451
        %468 = vst [vmem:[%s230 + $0x60] sm:$0xff] %v452
        %469 = vst [vmem:[%s230 + $0x68] sm:$0xff] %v453
        %470 = vst [vmem:[%s230 + $0x70] sm:$0xff] %v454
        %471 = vst [vmem:[%s230 + $0x78] sm:$0xff] %v455
        %s472 = sand.u32 %s119, 1
        %s473 = scalar_lea.sflag [#allocation4], %s472
        %s474 = sand.u32 %s119, 1
        %s475 = smul.addr %s474, 128
        %s476 = scalar_lea.vmem [#allocation7], %s475
        // Predicated region
        $region45: #{tpu_custom_call.1} parent=35 // pred_check
          %p477 = pneg %p129
        $region46: #{tpu_custom_call.1} parent=35 // pred_check_branch
          %479 = sbr.rel (%p477) target = $region48
        $region47: #{tpu_custom_call.1} parent=35 // pred_region
          %s480 = smul.u32 16, %s22
          %s482 = ssub.s32 2048, 2048
          %483 = vsyncadd %s473, %s482
          %s484 = smul.addr %s480, 128
          %s485 = scalar_lea.hbm %s4, %s484
          %s486 = sshll.u32 %s476, 4
          %s487 = int_to_ptr.vmem [resolvable:$true] %s486
          %492 = dma.vmem_to_hbm [thread:$0]  %s487, 2048, %s485, %s473, 128, 128, 8
        $region48: #{tpu_custom_call.1} parent=35 // pred_fallthru
          _
      $region36: #{tpu_custom_call.1} parent=5 // pred_fallthru
        _
      %p493 = scmp.le.s32.totalorder 2, %s17
      // Predicated region
      $region49: #{tpu_custom_call.1} parent=5 // pred_check
        %p494 = pneg %p493
      $region50: #{tpu_custom_call.1} parent=5 // pred_check_branch
        %496 = sbr.rel (%p494) target = $region52
      $region51: #{tpu_custom_call.1} parent=5 // pred_region
        %s497 = ssub.s32 %s17, 2
        // Predicated region
        $region53: #{tpu_custom_call.1} parent=51 // pred_check
          %p498 = pneg %p135
        $region54: #{tpu_custom_call.1} parent=51 // pred_check_branch
          %500 = sbr.rel (%p498) target = $region56
        $region55: #{tpu_custom_call.1} parent=51 // pred_region
          %s501 = sand.u32 %s120, 1
          %s502 = scalar_lea.sflag [#allocation4], %s501
          %s503 = sand.u32 %s120, 1
          %s504 = smul.addr %s503, 128
          %s505 = scalar_lea.vmem [#allocation7], %s504
          %506 = dma.done %s502, 2048
        $region56: #{tpu_custom_call.1} parent=51 // pred_fallthru
          _
      $region52: #{tpu_custom_call.1} parent=5 // pred_fallthru
        _
    $region6: #{tpu_custom_call.1} parent=1 // loop_footer
      %s21 = sadd.s32 1, %s17
    $region7: #{tpu_custom_call.1} parent=1 // loop_footer_branch
      %16 = sbr.rel target = $region3
    $region8: #{tpu_custom_call.1} parent=1 // loop_exit
      _
    %507 = vsyncpa [#allocation3], 1
    %s508 = scalar_lea.sflag [#allocation3], 1
    %509 = vsyncpa %s508, 1
    %510 = vsyncpa [#allocation6], 1
    %511 = vsyncpa [#allocation4], 1
    %s512 = scalar_lea.sflag [#allocation4], 1
    %513 = vsyncpa %s512, 1

</llo_original>
